<compile_context>
chip_gen: v7x
topology: tpu7x:2x2x1
jax: 0.10.0
libtpu: 0.0.40
codegen_flags: <defaults>
</compile_context>

<pallas_src>
import functools

import jax
import jax.numpy as jnp
from jax.experimental import pallas as pl
from jax.experimental.pallas import tpu as pltpu


# ---------------------------------------------------------------------------
# One-time roll-direction probe.  pltpu.roll follows jnp.roll semantics
# (out[i] = in[i - shift]); the pooling masks depend on that orientation, so
# probe it once with a tiny kernel and bake the result in as a *static* bool —
# zero cost in the hot kernel, robust if the convention ever differs.
# ---------------------------------------------------------------------------
_ROLL_LIKE_JNP = None


def _roll_is_jnp_convention() -> bool:
    global _ROLL_LIKE_JNP
    if _ROLL_LIKE_JNP is None:
        def probe(x_ref, o_ref):
            o_ref[...] = pltpu.roll(x_ref[...], 1, axis=1)

        lanes = jnp.broadcast_to(jax.lax.iota(jnp.int32, 128), (8, 128))
        rolled = pl.pallas_call(
            probe, out_shape=jax.ShapeDtypeStruct((8, 128), jnp.int32))(lanes)
        _ROLL_LIKE_JNP = bool(int(jax.device_get(rolled)[0, 1]) == 0)
    return _ROLL_LIKE_JNP


def _msc_kernel(x_ref, row_ref, w_ref, b_ref, o_ref, *, width, roll_like_jnp):
    """One (C, P) pixel tile, P = TH * W pixels flattened row-major on lanes.

    x_ref   : (C, P) input tile.
    row_ref : (1, P) int32 tile-local row index (flat_pixel // W).
    w_ref   : (3, C, C) 1x1-conv weights, (branch, out_ch, in_ch), x dtype.
    b_ref   : (C, 1) f32 bias column.
    o_ref   : (C, P) output tile.
    """
    p = x_ref.shape[-1]
    x = x_ref[...]
    row = row_ref[...]                                          # (1, P) int32
    col = jax.lax.broadcasted_iota(jnp.int32, (1, p), 1) & 3    # col % 4 (W % 4 == 0)

    def merge(v, first_half, s):
        # `v` holds the max over aligned groups of size s along the flattened
        # pixel axis (replicated at every position); return the max over
        # aligned groups of size 2*s.  Positions in the first half of their
        # 2*s-group partner with flat index f + s, the rest with f - s.
        # Alignment (W % 4 == 0, TH % 4 == 0, tile starts on a 4-row boundary)
        # guarantees the selected partner never wraps across the tile edge.
        a = pltpu.roll(v, s, axis=1)        # value at f - s (jnp convention)
        b = pltpu.roll(v, p - s, axis=1)    # value at f + s (jnp convention)
        at_plus, at_minus = (b, a) if roll_like_jnp else (a, b)
        return jnp.maximum(v, jnp.where(first_half, at_plus, at_minus))

    # MaxPool2d(2,2) + nearest upsample == aligned 2x2 block max, replicated.
    p1 = merge(x, (col & 1) == 0, 1)                 # columns: pairs
    p1 = merge(p1, (row & 1) == 0, width)            # rows:    pairs
    # MaxPool2d(4,4) + nearest upsample, built hierarchically on top of p1.
    p2 = merge(p1, col < 2, 2)                       # columns: pairs -> fours
    p2 = merge(p2, (row & 3) < 2, 2 * width)         # rows:    pairs -> fours

    # 1x1 conv over cat([x, x1, x2], channel) on the MXU, f32 accumulation.
    acc = jnp.dot(w_ref[0], x, preferred_element_type=jnp.float32)
    acc = acc + jnp.dot(w_ref[1], p1, preferred_element_type=jnp.float32)
    acc = acc + jnp.dot(w_ref[2], p2, preferred_element_type=jnp.float32)
    acc = acc + b_ref[...]                           # (C, 1) lane-broadcast
    o_ref[...] = jnp.maximum(acc, 0.0).astype(o_ref.dtype)


def _choose_tile_rows(H, W, C, itemsize, target_bytes):
    """Pick the per-block row count TH: TH | H and TH % 4 == 0 (2x2 / 4x4 pool
    groups never straddle a tile), the largest such value whose tile fits
    `target_bytes`, preferring lane-dense tiles (TH*W % 128 == 0).  Falls back
    to the smallest legal tile (never to a giant TH == H) if nothing fits."""
    bytes_per_row = max(1, C * W * itemsize)
    cands = [d for d in range(4, H + 1, 4) if H % d == 0]
    if not cands:
        return H
    fitting = [d for d in cands if d * bytes_per_row <= target_bytes]
    pool = fitting if fitting else cands[:1]
    dense = [d for d in pool if (d * W) % 128 == 0]
    return max(dense) if dense else max(pool)


@functools.partial(jax.jit, static_argnames=("roll_like_jnp", "tile_target_bytes"))
def _msc_forward_impl(x, conv_w, conv_b, *, roll_like_jnp, tile_target_bytes):
    N, C, H, W = x.shape
    assert conv_w.shape == (C, 3 * C, 1, 1) and conv_b.shape == (C,)
    assert H % 4 == 0 and W % 4 == 0, "pool(4,4) + nearest needs H, W % 4 == 0"
    # TODO(synk): ragged H/W (PyTorch floors the pooled size) is not handled.

    TH = _choose_tile_rows(H, W, C, x.dtype.itemsize, tile_target_bytes)
    if N * (H // TH) < 2 and H % 8 == 0:
        TH = min(TH, H // 2)   # expose >= 2 grid steps so both v7x cores work
    P = TH * W
    grid = (N, H // TH)

    # Lane-dense view: pixels flattened row-major onto the last (lane) axis.
    x_flat = x.reshape(N, C, H * W)
    # Tile-local row index of every pixel (identical for every tile); avoids
    # in-kernel integer division by W.
    row_idx = jnp.repeat(jnp.arange(TH, dtype=jnp.int32), W).reshape(1, P)
    # (branch, out_ch, in_ch) weight blocks for the [x, x1, x2] concat order;
    # keep them in the input dtype so bf16 inputs feed the MXU natively.
    w3 = conv_w.reshape(C, 3, C).transpose(1, 0, 2).astype(x.dtype)
    b2 = conv_b.reshape(C, 1).astype(jnp.float32)

    tile_bytes = C * P * x.dtype.itemsize
    # Budget ~2x in + 2x out double buffers plus in-body temporaries (x/p1/p2
    # in the input dtype, one f32 accumulator, transient rolls); capped so it
    # stays safe on v7x's 64 MiB VMEM.  Raise tile_target_bytes on v5e/v6e.
    vmem_limit = int(min(48 * 1024 * 1024, max(32 * 1024 * 1024, 14 * tile_bytes)))

    out_flat = pl.pallas_call(
        functools.partial(_msc_kernel, width=W, roll_like_jnp=roll_like_jnp),
        out_shape=jax.ShapeDtypeStruct((N, C, H * W), x.dtype),
        grid_spec=pl.GridSpec(
            grid=grid,
            in_specs=[
                pl.BlockSpec((None, C, P), lambda n, t: (n, 0, t)),   # x tile
                pl.BlockSpec((1, P), lambda n, t: (0, 0)),            # row idx
                pl.BlockSpec((3, C, C), lambda n, t: (0, 0, 0)),      # weights
                pl.BlockSpec((C, 1), lambda n, t: (0, 0)),            # bias
            ],
            out_specs=pl.BlockSpec((None, C, P), lambda n, t: (n, 0, t)),
        ),
        compiler_params=pltpu.CompilerParams(
            dimension_semantics=("parallel", "parallel"),
            vmem_limit_bytes=vmem_limit,
        ),
    )(x_flat, row_idx, w3, b2)
    return out_flat.reshape(N, C, H, W)


def msc_forward(x, conv_w, conv_b, *, tile_target_bytes=3 * 1024 * 1024):
    """MSC forward.  x: (N, C, H, W); conv_w: (C, 3C, 1, 1); conv_b: (C,)."""
    return _msc_forward_impl(
        x, conv_w, conv_b,
        roll_like_jnp=_roll_is_jnp_convention(),
        tile_target_bytes=tile_target_bytes)


def _msc_reference(x, conv_w, conv_b):
    # Plain-JAX reference matching the PyTorch forward (NCHW).
    N, C, H, W = x.shape
    p1 = x.reshape(N, C, H // 2, 2, W // 2, 2).max(axis=(3, 5))
    x1 = jnp.repeat(jnp.repeat(p1, 2, axis=2), 2, axis=3)
    p2 = x.reshape(N, C, H // 4, 4, W // 4, 4).max(axis=(3, 5))
    x2 = jnp.repeat(jnp.repeat(p2, 4, axis=2), 4, axis=3)
    cat = jnp.concatenate([x, x1, x2], axis=1)
    w = conv_w.reshape(C, 3 * C)
    out = jnp.einsum('nkhw,ok->nohw', cat, w,
                     precision=jax.lax.Precision.HIGHEST)
    out = out + conv_b.reshape(1, C, 1, 1)
    return jnp.maximum(out, 0.0)


if __name__ == "__main__":
    key = jax.random.PRNGKey(0)
    k_x, k_w, k_b = jax.random.split(key, 3)

    N, C, H, W = 2, 8, 16, 16
    x = jax.random.normal(k_x, (N, C, H, W), dtype=jnp.float32)
    # Deterministic synthetic Conv2d(3C, C, kernel_size=1) parameters.
    conv_w = jax.random.normal(k_w, (C, 3 * C, 1, 1), dtype=jnp.float32) * 0.1
    conv_b = jax.random.normal(k_b, (C,), dtype=jnp.float32) * 0.1

    out = jax.block_until_ready(msc_forward(x, conv_w, conv_b))
    ref = _msc_reference(x, conv_w, conv_b)

    assert out.shape == (N, C, H, W)
    # f32 MXU matmul keeps full f32 accuracy; bf16 inputs would need a looser
    # tolerance here.
    assert bool(jnp.allclose(out, ref, atol=1e-4, rtol=1e-4)), "mismatch vs reference"

    print("KERNEL_OK")
</pallas_src>

<mosaic_0001>
module attributes {stable_mosaic.version = 11 : i64} {
  func.func @probe(%arg0: memref<8x128xi32, #tpu.memory_space<vmem>>, %arg1: memref<8x128xi32, #tpu.memory_space<vmem>>) attributes {dimension_semantics = [], scalar_prefetch = 0 : i64, scratch_operands = 0 : i64, tpu.core_type = #tpu.core_type<tc>} {
    %c0 = arith.constant 0 : index
    %c0_0 = arith.constant 0 : index
    %0 = vector.load %arg0[%c0, %c0_0] : memref<8x128xi32, #tpu.memory_space<vmem>>, vector<8x128xi32>
    %c1_i32 = arith.constant 1 : i32
    %1 = tpu.dynamic_rotate %0 by %c1_i32 dim 1 : vector<8x128xi32>, i32 -> vector<8x128xi32>
    %c0_1 = arith.constant 0 : index
    %c0_2 = arith.constant 0 : index
    %2 = vector.load %arg1[%c0_1, %c0_2] : memref<8x128xi32, #tpu.memory_space<vmem>>, vector<8x128xi32>
    tpu.vector_store %arg1[%c0_1, %c0_2], %1 {strides = array<i32>} : memref<8x128xi32, #tpu.memory_space<vmem>>, vector<8x128xi32>,
    return
  }
}

</mosaic_0001>

<llo_original>
// kernel: tpu_custom_call.1
$region0: #{tpu_custom_call.1}
  #allocation0 [shape = 'u32[]', space=smem, size = 0x4, offset = 0x4, fixed_abs, tag = 'smem constant byte address 0x4 - core index']
  #allocation1 [shape = 'u32[144,128]{1,0:T(1,128)}', space=vmem, size = 0x12000, scoped, tag = 'internal scratch']
  %s0 = inlined_call_operand.hbm [shape: s32[8,128], index: 0, kind: input, shape index: {}]
  %s1 = inlined_call_operand.hbm [shape: s32[8,128], index: 1, kind: output, shape index: {}]
  %s2 = sld [smem:[#allocation0]]
  $region18: #{tpu_custom_call.1} parent=0
    _
  %s4 = ssub.s32 1, %s2
  %s5 = scalar_select 0, %s4, %s2
  $region1: #{tpu_custom_call.1} parent=0
    #allocation2 [shape = 'u8[4096]{0}', space=vmem, size = 0x1000, scoped, tag = 'input window, operand 0, single buffered']
    #allocation3 [shape = 's32[1]{0}', space=sflag, size = 0x4, scoped, tag = 'scoped memory for tpu_custom_call.1']
    #allocation4 [shape = 's32[1]{0}', space=sflag, size = 0x4, scoped, tag = 'scoped memory for tpu_custom_call.1']
    #allocation5 [shape = 'u8[4096]{0}', space=vmem, size = 0x1000, scoped, tag = 'output window, operand 0, single buffered']
    %6 = vsyncpa [#allocation3], 0
    %7 = vsyncpa [#allocation4], 0
    // Predicated region
    $region2: #{tpu_custom_call.1} parent=1 // pred_check
      _
    $region3: #{tpu_custom_call.1} parent=1 // pred_check_branch
      %9 = sbr.rel (0) target = $region5
    $region4: #{tpu_custom_call.1} parent=1 // pred_region
      %s11 = ssub.s32 128, 128
      %12 = vsyncadd [#allocation3], %s11
      %s14 = sshll.u32 [#allocation2], 4
      %s15 = int_to_ptr.vmem [resolvable:$true] %s14
      %17 = dma.hbm_to_vmem [thread:$0]  %s0, 128, %s15, [#allocation3]
    $region5: #{tpu_custom_call.1} parent=1 // pred_fallthru
      _
    // Predicated region
    $region6: #{tpu_custom_call.1} parent=1 // pred_check
      _
    $region7: #{tpu_custom_call.1} parent=1 // pred_check_branch
      %19 = sbr.rel (0) target = $region9
    $region8: #{tpu_custom_call.1} parent=1 // pred_region
      %20 = dma.done [#allocation3], 128
    $region9: #{tpu_custom_call.1} parent=1 // pred_fallthru
      _
    %v21 = vld [vmem:[#allocation2] sm:$0xff]
    %22 = vrot.lane.b32.xlu0 %v21, 1
    %v23 = vpop.permute.xlu0 %22
    %24 = vst [vmem:[#allocation5] sm:$0xff] %v23
    // Predicated region
    $region10: #{tpu_custom_call.1} parent=1 // pred_check
      _
    $region11: #{tpu_custom_call.1} parent=1 // pred_check_branch
      %26 = sbr.rel (0) target = $region13
    $region12: #{tpu_custom_call.1} parent=1 // pred_region
      %s28 = ssub.s32 128, 128
      %29 = vsyncadd [#allocation4], %s28
      %s31 = sshll.u32 [#allocation5], 4
      %s32 = int_to_ptr.vmem [resolvable:$true] %s31
      %34 = dma.vmem_to_hbm [thread:$0]  %s32, 128, %s1, [#allocation4]
    $region13: #{tpu_custom_call.1} parent=1 // pred_fallthru
      _
    // Predicated region
    $region14: #{tpu_custom_call.1} parent=1 // pred_check
      _
    $region15: #{tpu_custom_call.1} parent=1 // pred_check_branch
      %36 = sbr.rel (0) target = $region17
    $region16: #{tpu_custom_call.1} parent=1 // pred_region
      %37 = dma.done [#allocation4], 128
    $region17: #{tpu_custom_call.1} parent=1 // pred_fallthru
      _
    %38 = vsyncpa [#allocation3], 1
    %39 = vsyncpa [#allocation4], 1

</llo_original>
